<compile_context>
chip_gen: v6e
topology: v6e:2x2x1
jax: 0.10.0
libtpu: 0.0.40
codegen_flags: <defaults>
</compile_context>

<pallas_src>
import math
import numpy as np

import jax
import jax.numpy as jnp
from jax.experimental import pallas as pl
from jax.experimental.pallas import tpu as pltpu


# ---------------------------------------------------------------------------
# Slice-profile kernel construction (pure numpy, mirrors the PyTorch module).
# ---------------------------------------------------------------------------
def smoothed_box(thickness, pad=None, spacing=None):
    if not pad:
        pad = np.ceil(thickness / 2)
    if not spacing:
        spacing = thickness
    bk = np.zeros(int(spacing) + 2 * int(pad))
    l = np.ceil(thickness) + 2 * pad
    x = np.abs(np.arange(0, l) - (l - 1) / 2)
    y = np.piecewise(
        x,
        [x <= thickness / 3,
         (x > thickness / 3) * (x <= thickness * 2 / 3),
         x > thickness * 2 / 3],
        [1, lambda x: 0.5 - 0.5 * np.sin(3 * np.pi * (x / thickness - 0.5)), 0])
    bk[:y.shape[0]] = y
    return bk


def _conv_matrix(k, length, pad, stride):
    """(length, out) cross-correlation matrix with zero-padding folded in.

    Rows that would multiply the zero pads are dropped, so the input volume is
    never padded/copied in HBM.
    """
    K = int(k.shape[0])
    lp = length + 2 * pad
    out = (lp - K) // stride + 1
    A = np.zeros((lp, out), dtype=np.float64)
    for j in range(out):
        A[j * stride:j * stride + K, j] = k
    return A[pad:pad + length, :].astype(np.float32), out


def _round_up(x, m):
    return ((x + m - 1) // m) * m


def _vmem_policy():
    """(target input-tile bytes, scoped VMEM budget) per chip generation."""
    cap = 64 << 20
    try:
        info = pltpu.get_tpu_info()
        cap = int(getattr(info, "vmem_capacity_bytes", cap) or cap)
    except Exception:
        pass
    if cap >= (100 << 20):            # v5e / v6e: 128 MiB physical VMEM
        return 8 << 20, 96 << 20
    return 6 << 20, 44 << 20          # v7x: 64 MiB physical VMEM


# ---------------------------------------------------------------------------
# Kernels
# ---------------------------------------------------------------------------
def _blur_rows_kernel(x_ref, b_ref, o_ref):
    # (block_rows, g*W) @ (g*W, g*W_out) on the MXU, f32 accumulation.
    # The LHS tile is cast to f32 in VMEM so the slice-profile coefficients
    # stay exact even for bf16 inputs (kernel is HBM-bound on v6e/v7x).
    o_ref[...] = jnp.dot(
        x_ref[...].astype(jnp.float32), b_ref[...],
        preferred_element_type=jnp.float32).astype(o_ref.dtype)


def _blur_left_kernel(x_ref, a_ref, o_ref):
    # Blur along the second-to-last axis of a (bb, L, tt) tile:
    # for each slab i: (L_out, L) @ (L, tt) -> (L_out, tt).  bb is small and
    # statically unrolled.
    a = a_ref[...]
    for i in range(x_ref.shape[0]):
        o_ref[i] = jnp.dot(
            a, x_ref[i].astype(jnp.float32),
            preferred_element_type=jnp.float32).astype(o_ref.dtype)


# ---------------------------------------------------------------------------
# Blur along the ORIGINAL last axis (packed-row right-multiply).
# ---------------------------------------------------------------------------
def _blur_last_axis(x, A_np, W_out, io_dtype, unit, target_tile, vmem_budget):
    N, C, D, H, W = x.shape
    M = N * C * D * H
    in_itemsize = jnp.dtype(io_dtype).itemsize

    # Row-packing factor g: pack g consecutive rows per output row so the
    # output last dim is close to a full 128-lane vreg.
    if W_out >= 128:
        g_target = 1
    else:
        g_target = max(1, 128 // W_out)
        # Bound the block-diagonal RHS (g^2 * W * W_out * 4 bytes) to ~4 MiB.
        g_cap = max(1, int(math.sqrt((4 << 20) / (4.0 * W * W_out))))
        g_target = min(g_target, g_cap)
    # Avoid any input padding: largest g <= g_target that divides M.
    g = 1
    for cand in range(min(g_target, M), 0, -1):
        if M % cand == 0:
            g = cand
            break

    Wg, Wg_out = g * W, g * W_out
    B_np = np.zeros((Wg, Wg_out), dtype=np.float32)
    for i in range(g):
        B_np[i * W:(i + 1) * W, i * W_out:(i + 1) * W_out] = A_np
    B = jnp.asarray(B_np)
    # TODO(synk): single-buffer this grid-invariant RHS (pipeline_mode=
    # pl.Buffered(1)); with the new g rule it is <= 4 MiB (usually << 1 MiB),
    # so the double-buffer waste is negligible and we keep the default here.

    M_packed = M // g
    x_g = x.reshape(M_packed, Wg)                 # metadata-only reshape

    bytes_per_row = Wg * in_itemsize
    block_rows = max(unit, (target_tile // bytes_per_row) // unit * unit)
    # Keep >= ~4 grid steps so v7x's two TensorCores each get work.
    block_rows = min(block_rows, _round_up(max(1, pl.cdiv(M_packed, 4)), unit))
    block_rows = min(block_rows, M_packed)

    b_bytes = Wg * Wg_out * 4

    def vmem_need(br):
        cast_extra = 0 if io_dtype == jnp.float32 else br * Wg * 4
        return (2 * (br * Wg * in_itemsize + br * Wg_out * in_itemsize + b_bytes)
                + cast_extra + (2 << 20))

    while vmem_need(block_rows) > vmem_budget and block_rows > unit:
        block_rows = max(unit, (block_rows // 2) // unit * unit)
        block_rows = min(block_rows, M_packed)
    vmem_limit = int(min(max(vmem_need(block_rows), 16 << 20), vmem_budget))

    cost = pl.CostEstimate(
        flops=2 * M_packed * Wg * Wg_out,          # executed (block-diag) FLOPs
        transcendentals=0,
        bytes_accessed=(M_packed * Wg * in_itemsize
                        + M_packed * Wg_out * in_itemsize + b_bytes))

    out = pl.pallas_call(
        _blur_rows_kernel,
        out_shape=jax.ShapeDtypeStruct((M_packed, Wg_out), io_dtype),
        grid=(pl.cdiv(M_packed, block_rows),),
        in_specs=[
            pl.BlockSpec((block_rows, Wg), lambda i: (i, 0)),
            pl.BlockSpec((Wg, Wg_out), lambda i: (0, 0)),   # grid-invariant RHS
        ],
        out_specs=pl.BlockSpec((block_rows, Wg_out), lambda i: (i, 0)),
        compiler_params=pltpu.CompilerParams(
            dimension_semantics=("parallel",),
            vmem_limit_bytes=vmem_limit),
        cost_estimate=cost,
    )(x_g, B)

    return out.reshape(N, C, D, H, W_out)          # metadata-only reshapes


# ---------------------------------------------------------------------------
# Blur along an ORIGINAL middle axis (left-multiply per slab) — this is how the
# ChangeCoord permutation is folded away instead of transposing the input.
# ---------------------------------------------------------------------------
def _blur_middle_axis(x, A_np, L_out, blur_axis, io_dtype, unit,
                      target_tile, vmem_budget):
    del unit  # sublane rounding applies to the (full-dim) L axis here
    N, C, D, H, W = x.shape
    in_itemsize = jnp.dtype(io_dtype).itemsize
    if blur_axis == 2:                 # blur along D
        Bc, L, T = N * C, D, H * W
    else:                              # blur_axis == 3: blur along H
        Bc, L, T = N * C * D, H, W
    x3 = x.reshape(Bc, L, T)           # metadata-only reshape

    A_T = jnp.asarray(A_np.T)          # (L_out, L), float32, tiny

    # Lane tile along T.  TODO(synk): for tiny trailing dims (T < 128) pack
    # several slabs along the lane axis to regain unmasked stores.
    tt = T if T <= 1024 else 512       # 512 is a multiple of 128; ragged tail ok
    n_ttiles = pl.cdiv(T, tt)

    slab_bytes = max(1, L * tt * in_itemsize)
    bb = max(1, min(16, target_tile // slab_bytes))
    if n_ttiles == 1:                  # keep >= ~4 grid steps for v7x's 2 TCs
        bb = min(bb, max(1, pl.cdiv(Bc, 4)))
    bb = min(bb, Bc)

    a_bytes = L_out * L * 4

    def vmem_need(b):
        cast_extra = 0 if io_dtype == jnp.float32 else b * L * tt * 4
        return (2 * (b * L * tt * in_itemsize + b * L_out * tt * in_itemsize
                     + a_bytes) + cast_extra + (2 << 20))

    while vmem_need(bb) > vmem_budget and bb > 1:
        bb = max(1, bb // 2)
    vmem_limit = int(min(max(vmem_need(bb), 16 << 20), vmem_budget))

    cost = pl.CostEstimate(
        flops=2 * Bc * L_out * L * T,
        transcendentals=0,
        bytes_accessed=(Bc * L * T * in_itemsize
                        + Bc * L_out * T * in_itemsize + a_bytes))

    out = pl.pallas_call(
        _blur_left_kernel,
        out_shape=jax.ShapeDtypeStruct((Bc, L_out, T), io_dtype),
        grid=(pl.cdiv(Bc, bb), n_ttiles),
        in_specs=[
            pl.BlockSpec((bb, L, tt), lambda i, j: (i, 0, j)),
            pl.BlockSpec((L_out, L), lambda i, j: (0, 0)),   # grid-invariant
        ],
        out_specs=pl.BlockSpec((bb, L_out, tt), lambda i, j: (i, 0, j)),
        compiler_params=pltpu.CompilerParams(
            dimension_semantics=("parallel", "parallel"),
            vmem_limit_bytes=vmem_limit),
        cost_estimate=cost,
    )(x3, A_T)

    if blur_axis == 2:
        return out.reshape(N, C, L_out, H, W)      # metadata-only
    return out.reshape(N, C, D, L_out, W)          # metadata-only


# ---------------------------------------------------------------------------
# MRIacq forward
# ---------------------------------------------------------------------------
def mriacq_forward(x, perm_dims, slice_thickness, slice_spacing,
                   slice_model='smoothed-box', normalize_kernel=True):
    assert slice_model == 'smoothed-box'
    perm = (0, 1, perm_dims[0] + 2, perm_dims[1] + 2, perm_dims[2] + 2)
    blur_axis = int(perm_dims[2]) + 2          # original axis the blur acts on

    pad = int(np.ceil(slice_thickness / 2))
    bk = smoothed_box(slice_thickness, pad=pad, spacing=slice_spacing)
    k = (bk / bk.sum()) if normalize_kernel else bk
    stride = int(slice_spacing)

    N, C, D, H, W = x.shape
    # conv3d in the PyTorch module has kernel shape (1,1,1,1,K) -> requires C==1
    assert C == 1

    L = x.shape[blur_axis]
    A_np, L_out = _conv_matrix(k, L, pad, stride)
    assert L_out >= 1

    # Keep bf16 inputs as bf16 in HBM (mem-bound kernel); everything else f32.
    io_dtype = x.dtype if x.dtype in (jnp.bfloat16, jnp.float32) else jnp.float32
    if x.dtype != io_dtype:
        x = x.astype(io_dtype)
    unit = 16 if io_dtype == jnp.bfloat16 else 8
    target_tile, vmem_budget = _vmem_policy()

    if blur_axis == 4:
        y_o = _blur_last_axis(x, A_np, L_out, io_dtype, unit,
                              target_tile, vmem_budget)
    else:
        y_o = _blur_middle_axis(x, A_np, L_out, blur_axis, io_dtype, unit,
                                target_tile, vmem_budget)

    # ChangeCoord is applied to the (spacing-times smaller) OUTPUT only; the
    # input volume is never transposed or padded in HBM.
    # TODO(synk): fold this small output permutation into the out_specs
    # index_map to remove the last transpose pass as well.
    if perm == (0, 1, 2, 3, 4):
        return y_o
    return jnp.transpose(y_o, perm)


# ---------------------------------------------------------------------------
# Pure-JAX reference (for correctness check only)
# ---------------------------------------------------------------------------
def mriacq_reference(x, perm_dims, slice_thickness, slice_spacing,
                     normalize_kernel=True):
    perm = (0, 1, perm_dims[0] + 2, perm_dims[1] + 2, perm_dims[2] + 2)
    xp = jnp.transpose(x, perm)
    pad = int(np.ceil(slice_thickness / 2))
    bk = smoothed_box(slice_thickness, pad=pad, spacing=slice_spacing)
    k = (bk / bk.sum()) if normalize_kernel else bk
    N, C, D, H, W = xp.shape
    lhs = xp.reshape(N * C * D * H, 1, W).astype(jnp.float32)
    rhs = jnp.asarray(k, jnp.float32)[None, None, :]
    y = jax.lax.conv_general_dilated(
        lhs, rhs, window_strides=(int(slice_spacing),), padding=[(pad, pad)])
    return y.reshape(N, C, D, H, y.shape[-1])


if __name__ == "__main__":
    # Small, module-consistent shapes: batch=2, channels=1 (required by the
    # conv3d path), spatial=16^3.
    key = jax.random.PRNGKey(0)
    x = jax.random.normal(key, (2, 1, 16, 16, 16), dtype=jnp.float32)

    slice_thickness = 3.0
    slice_spacing = 4.0        # spacing >= ceil(thickness), as in the module

    fwd = jax.jit(mriacq_forward, static_argnums=(1, 2, 3))

    # Exercise every code path: blur along the original last axis (identity
    # and leading-swap perms) and along the middle axes (folded permutation).
    for perm_dims in [(0, 1, 2), (1, 0, 2), (2, 0, 1), (1, 2, 0)]:
        y = fwd(x, perm_dims, slice_thickness, slice_spacing)
        y = jax.block_until_ready(y)

        y_ref = mriacq_reference(x, perm_dims, slice_thickness, slice_spacing)
        y_ref = jax.block_until_ready(y_ref)

        assert y.shape == y_ref.shape, (perm_dims, y.shape, y_ref.shape)
        assert jnp.allclose(y, y_ref, atol=1e-5, rtol=1e-5), perm_dims

    print("KERNEL_OK")
</pallas_src>

<mosaic_0001>
module attributes {stable_mosaic.version = 11 : i64} {
  func.func @_blur_rows_kernel(%arg0: i32, %arg1: memref<8x512xf32, #tpu.memory_space<vmem>>, %arg2: memref<512x128xf32, #tpu.memory_space<vmem>>, %arg3: memref<8x128xf32, #tpu.memory_space<vmem>>) attributes {dimension_semantics = [#tpu.dimension_semantics<parallel>], iteration_bounds = array<i64: 2>, scalar_prefetch = 0 : i64, scratch_operands = 0 : i64, tpu.core_type = #tpu.core_type<tc>, window_params = [{transform_indices = @transform_0, window_bounds = array<i64: 8, 512>}, {pipeline_mode = #tpu.pipeline_mode<synchronous>, transform_indices = @transform_1, window_bounds = array<i64: 512, 128>}, {transform_indices = @transform_2, window_bounds = array<i64: 8, 128>}]} {
    %c0 = arith.constant 0 : index
    %c0_0 = arith.constant 0 : index
    %0 = vector.load %arg1[%c0, %c0_0] : memref<8x512xf32, #tpu.memory_space<vmem>>, vector<8x512xf32>
    %c0_1 = arith.constant 0 : index
    %c0_2 = arith.constant 0 : index
    %1 = vector.load %arg2[%c0_1, %c0_2] : memref<512x128xf32, #tpu.memory_space<vmem>>, vector<512x128xf32>
    %cst = arith.constant dense<0.000000e+00> : vector<8x128xf32>
    %2 = tpu.matmul %0, %1, %cst {dimension_numbers = #tpu.dot_dimension_numbers<[1], [0], [0], [1], [0, 0, 1, 1], [], []>} : vector<8x512xf32>, vector<512x128xf32>, vector<8x128xf32> -> vector<8x128xf32>
    %c0_3 = arith.constant 0 : index
    %c0_4 = arith.constant 0 : index
    %3 = vector.load %arg3[%c0_3, %c0_4] : memref<8x128xf32, #tpu.memory_space<vmem>>, vector<8x128xf32>
    tpu.vector_store %arg3[%c0_3, %c0_4], %2 {strides = array<i32>} : memref<8x128xf32, #tpu.memory_space<vmem>>, vector<8x128xf32>,
    return
  }
  func.func @transform_0(%arg0: i32) -> (i32, i32) {
    %c0_i32 = arith.constant 0 : i32
    %c0_i32_0 = arith.constant 0 : i32
    return %arg0, %c0_i32 : i32, i32
  }
  func.func @transform_1(%arg0: i32) -> (i32, i32) {
    %c0_i32 = arith.constant 0 : i32
    %c0_i32_0 = arith.constant 0 : i32
    %c0_i32_1 = arith.constant 0 : i32
    return %c0_i32, %c0_i32_0 : i32, i32
  }
  func.func @transform_2(%arg0: i32) -> (i32, i32) {
    %c0_i32 = arith.constant 0 : i32
    %c0_i32_0 = arith.constant 0 : i32
    return %arg0, %c0_i32 : i32, i32
  }
}

</mosaic_0001>

<llo_original>
// kernel: mriacq_forward.1
$region0: #{mriacq_forward.1}
  #allocation0 [shape = 'u32[]', space=smem, size = 0x4, offset = 0x4, fixed_abs, tag = 'smem constant byte address 0x4 - core index']
  #allocation1 [shape = 'u32[144,128]{1,0:T(1,128)}', space=vmem, size = 0x12000, scoped, tag = 'internal scratch']
  %s0 = inlined_call_operand.vmem [shape: f32[16,512], index: 0, kind: input, shape index: {}]
  %s1 = inlined_call_operand.vmem [shape: f32[512,128], index: 1, kind: input, shape index: {}]
  %s2 = inlined_call_operand.vmem [shape: f32[16,128], index: 2, kind: output, shape index: {}]
  %s3 = sld [smem:[#allocation0]]
  $region41: #{mriacq_forward.1} parent=0
    _
  %s5 = ssub.s32 1, %s3
  %s6 = scalar_select 0, %s5, %s3
  loop: start=0, step=1, limit=4
  $region2: #{mriacq_forward.1} parent=0 // loop_pre_header
    _
  $region3: #{mriacq_forward.1} parent=0 // loop_header
    %s8 = sphi 0, %s12
    %p9 = scmp.ge.s32.totalorder %s8, 4
    %s18 = sphi 0, %s20
    %s21 = sphi 0, %s18
    %s22 = sphi 0, %s21
    %s38 = sphi 0, %s22
    %s42 = sphi 0, %s42
    %s44 = sphi 0, %s42
    %s45 = sphi 0, %s44
    %s59 = sphi 0, %s45
    %s65 = sphi 0, %s67
    %s68 = sphi 0, %s65
    %s69 = sphi 0, %s68
    %s85 = sphi 0, %s69
  $region4: #{mriacq_forward.1} parent=0 // loop_header_branch
    %11 = sbr.rel (%p9) target = $region8
  $region5: #{mriacq_forward.1} parent=0 // loop_body
    %s13 = ssub.s32 %s8, 1
    %s14 = ssub.s32 %s8, 2
    %s15 = sadd.s32 %s8, 1
    %s16 = ssub.s32 %s8, %s15
    %p17 = scmp.eq.s32.totalorder %s16, 0
    %s19 = sadd.s32 %s18, 1
    %s20 = scalar_select %p17, %s18, %s19
    %p23 = pneg %p17
    %p24 = scmp.eq.s32.totalorder %s8, 1
    %p25 = por %p23, %p24
    %p26 = scmp.ne.s32.totalorder %s18, %s21
    %p27 = scmp.eq.s32.totalorder %s8, 0
    %p28 = por %p26, %p27
    %p29 = scmp.ne.s32.totalorder %s18, %s21
    %p30 = scmp.eq.s32.totalorder %s13, 1
    %p31 = por %p29, %p30
    %p32 = scmp.ne.s32.totalorder %s21, %s22
    %p33 = scmp.eq.s32.totalorder %s13, 0
    %p34 = por %p32, %p33
    %p35 = scmp.ne.s32.totalorder %s21, %s22
    %p36 = scmp.eq.s32.totalorder %s14, 1
    %p37 = por %p35, %p36
    %p39 = scmp.ne.s32.totalorder %s22, %s38
    %p40 = scmp.eq.s32.totalorder %s14, 0
    %p41 = por %p39, %p40
    %s43 = sadd.s32 %s42, 1
    %p46 = scmp.eq.s32.totalorder %s8, 1
    %p47 = scmp.ne.s32.totalorder %s42, %s44
    %p48 = scmp.eq.s32.totalorder %s8, 0
    %p49 = por %p47, %p48
    %p50 = scmp.ne.s32.totalorder %s42, %s44
    %p51 = scmp.eq.s32.totalorder %s13, 1
    %p52 = por %p50, %p51
    %p53 = scmp.ne.s32.totalorder %s44, %s45
    %p54 = scmp.eq.s32.totalorder %s13, 0
    %p55 = por %p53, %p54
    %p56 = scmp.ne.s32.totalorder %s44, %s45
    %p57 = scmp.eq.s32.totalorder %s14, 1
    %p58 = por %p56, %p57
    %p60 = scmp.ne.s32.totalorder %s45, %s59
    %p61 = scmp.eq.s32.totalorder %s14, 0
    %p62 = por %p60, %p61
    %s63 = ssub.s32 %s8, %s15
    %p64 = scmp.eq.s32.totalorder %s63, 0
    %s66 = sadd.s32 %s65, 1
    %s67 = scalar_select %p64, %s65, %s66
    %p70 = pneg %p64
    %p71 = scmp.eq.s32.totalorder %s8, 1
    %p72 = por %p70, %p71
    %p73 = scmp.ne.s32.totalorder %s65, %s68
    %p74 = scmp.eq.s32.totalorder %s8, 0
    %p75 = por %p73, %p74
    %p76 = scmp.ne.s32.totalorder %s65, %s68
    %p77 = scmp.eq.s32.totalorder %s13, 1
    %p78 = por %p76, %p77
    %p79 = scmp.ne.s32.totalorder %s68, %s69
    %p80 = scmp.eq.s32.totalorder %s13, 0
    %p81 = por %p79, %p80
    %p82 = scmp.ne.s32.totalorder %s68, %s69
    %p83 = scmp.eq.s32.totalorder %s14, 1
    %p84 = por %p82, %p83
    %p86 = scmp.ne.s32.totalorder %s69, %s85
    %p87 = scmp.eq.s32.totalorder %s14, 0
    %p88 = por %p86, %p87
    %p89 = scmp.le.s32.totalorder 1, %s8
    %p90 = scmp.lt.s32.totalorder %s8, 3
    %p91 = pnand %p89, %p90
    %p92 = pneg %p91
    // Predicated region
    $region9: #{mriacq_forward.1} parent=5 // pred_check
      _
    $region10: #{mriacq_forward.1} parent=5 // pred_check_branch
      %94 = sbr.rel (%p91) target = $region12
    $region11: #{mriacq_forward.1} parent=5 // pred_region
      %s95 = ssub.s32 %s8, 1
      // Predicated region
      $region13: #{mriacq_forward.1} parent=11 // pred_check
        %p96 = pneg %p55
      $region14: #{mriacq_forward.1} parent=11 // pred_check_branch
        %98 = sbr.rel (%p96) target = $region16
      $region15: #{mriacq_forward.1} parent=11 // pred_region
        _
      $region16: #{mriacq_forward.1} parent=11 // pred_fallthru
        _
    $region12: #{mriacq_forward.1} parent=5 // pred_fallthru
      _
    %p99 = scmp.lt.s32.totalorder %s8, 2
    // Predicated region
    $region17: #{mriacq_forward.1} parent=5 // pred_check
      %p100 = pneg %p99
    $region18: #{mriacq_forward.1} parent=5 // pred_check_branch
      %102 = sbr.rel (%p100) target = $region20
    $region19: #{mriacq_forward.1} parent=5 // pred_region
      // Predicated region
      $region21: #{mriacq_forward.1} parent=19 // pred_check
        %p103 = pneg %p28
      $region22: #{mriacq_forward.1} parent=19 // pred_check_branch
        %105 = sbr.rel (%p103) target = $region24
      $region23: #{mriacq_forward.1} parent=19 // pred_region
        %p106 = scmp.lt.s32.totalorder %s8, 1
        %s107 = scalar_select %p106, %s8, 1
        %s108 = smul.addr %s107, 4
        %s109 = smul.addr %s108, 8
        %s110 = scalar_lea.vmem %s0, %s109
      $region24: #{mriacq_forward.1} parent=19 // pred_fallthru
        _
    $region20: #{mriacq_forward.1} parent=5 // pred_fallthru
      _
    %p111 = scmp.le.s32.totalorder 1, %s8
    %p112 = scmp.lt.s32.totalorder %s8, 3
    %p113 = pnand %p111, %p112
    %p114 = pneg %p113
    // Predicated region
    $region25: #{mriacq_forward.1} parent=5 // pred_check
      _
    $region26: #{mriacq_forward.1} parent=5 // pred_check_branch
      %116 = sbr.rel (%p113) target = $region28
    $region27: #{mriacq_forward.1} parent=5 // pred_region
      %s117 = ssub.s32 %s8, 1
      %p118 = scmp.lt.s32.totalorder %s13, 1
      %s119 = scalar_select %p118, %s13, 1
      %s120 = smul.addr %s119, 4
      %s121 = smul.addr %s120, 8
      %s122 = scalar_lea.vmem %s0, %s121
      %p123 = pneg %p34
      %p124 = pneg %p31
      %p125 = pneg %p55
      %p126 = pneg %p52
      %p127 = pneg %p81
      %p128 = pneg %p78
      %p129 = scmp.lt.s32.totalorder %s13, 1
      %s130 = scalar_select %p129, %s13, 1
      %s131 = smul.addr %s130, 8
      %s132 = scalar_lea.vmem %s2, %s131
      %p133 = scmp.lt.s32.totalorder %s13, 1
      %s134 = scalar_select %p133, %s13, 1
      %s135 = smul.addr %s134, 4
      %s136 = smul.addr %s135, 8
      %s137 = scalar_lea.vmem %s0, %s136
      %p138 = scmp.lt.s32.totalorder %s13, 1
      %s139 = scalar_select %p138, %s13, 1
      %s140 = smul.addr %s139, 8
      %s141 = scalar_lea.vmem %s2, %s140
      %v142 = vld [vmem:[%s137] sm:$0xff]
      %v143 = vld [vmem:[%s137 + $0x8] sm:$0xff]
      %v144 = vld [vmem:[%s137 + $0x10] sm:$0xff]
      %v145 = vld [vmem:[%s137 + $0x18] sm:$0xff]
      %v146 = vld [vmem:[%s1] sm:$0xff]
      %v147 = vld [vmem:[%s1 + $0x8] sm:$0xff]
      %v148 = vld [vmem:[%s1 + $0x10] sm:$0xff]
      %v149 = vld [vmem:[%s1 + $0x18] sm:$0xff]
      %v150 = vld [vmem:[%s1 + $0x20] sm:$0xff]
      %v151 = vld [vmem:[%s1 + $0x28] sm:$0xff]
      %v152 = vld [vmem:[%s1 + $0x30] sm:$0xff]
      %v153 = vld [vmem:[%s1 + $0x38] sm:$0xff]
      %v154 = vld [vmem:[%s1 + $0x40] sm:$0xff]
      %v155 = vld [vmem:[%s1 + $0x48] sm:$0xff]
      %v156 = vld [vmem:[%s1 + $0x50] sm:$0xff]
      %v157 = vld [vmem:[%s1 + $0x58] sm:$0xff]
      %v158 = vld [vmem:[%s1 + $0x60] sm:$0xff]
      %v159 = vld [vmem:[%s1 + $0x68] sm:$0xff]
      %v160 = vld [vmem:[%s1 + $0x70] sm:$0xff]
      %v161 = vld [vmem:[%s1 + $0x78] sm:$0xff]
      %v162 = vld [vmem:[%s1 + $0x80] sm:$0xff]
      %v163 = vld [vmem:[%s1 + $0x88] sm:$0xff]
      %v164 = vld [vmem:[%s1 + $0x90] sm:$0xff]
      %v165 = vld [vmem:[%s1 + $0x98] sm:$0xff]
      %v166 = vld [vmem:[%s1 + $0xa0] sm:$0xff]
      %v167 = vld [vmem:[%s1 + $0xa8] sm:$0xff]
      %v168 = vld [vmem:[%s1 + $0xb0] sm:$0xff]
      %v169 = vld [vmem:[%s1 + $0xb8] sm:$0xff]
      %v170 = vld [vmem:[%s1 + $0xc0] sm:$0xff]
      %v171 = vld [vmem:[%s1 + $0xc8] sm:$0xff]
      %v172 = vld [vmem:[%s1 + $0xd0] sm:$0xff]
      %v173 = vld [vmem:[%s1 + $0xd8] sm:$0xff]
      %v174 = vld [vmem:[%s1 + $0xe0] sm:$0xff]
      %v175 = vld [vmem:[%s1 + $0xe8] sm:$0xff]
      %v176 = vld [vmem:[%s1 + $0xf0] sm:$0xff]
      %v177 = vld [vmem:[%s1 + $0xf8] sm:$0xff]
      %v178 = vld [vmem:[%s1 + $0x100] sm:$0xff]
      %v179 = vld [vmem:[%s1 + $0x108] sm:$0xff]
      %v180 = vld [vmem:[%s1 + $0x110] sm:$0xff]
      %v181 = vld [vmem:[%s1 + $0x118] sm:$0xff]
      %v182 = vld [vmem:[%s1 + $0x120] sm:$0xff]
      %v183 = vld [vmem:[%s1 + $0x128] sm:$0xff]
      %v184 = vld [vmem:[%s1 + $0x130] sm:$0xff]
      %v185 = vld [vmem:[%s1 + $0x138] sm:$0xff]
      %v186 = vld [vmem:[%s1 + $0x140] sm:$0xff]
      %v187 = vld [vmem:[%s1 + $0x148] sm:$0xff]
      %v188 = vld [vmem:[%s1 + $0x150] sm:$0xff]
      %v189 = vld [vmem:[%s1 + $0x158] sm:$0xff]
      %v190 = vld [vmem:[%s1 + $0x160] sm:$0xff]
      %v191 = vld [vmem:[%s1 + $0x168] sm:$0xff]
      %v192 = vld [vmem:[%s1 + $0x170] sm:$0xff]
      %v193 = vld [vmem:[%s1 + $0x178] sm:$0xff]
      %v194 = vld [vmem:[%s1 + $0x180] sm:$0xff]
      %v195 = vld [vmem:[%s1 + $0x188] sm:$0xff]
      %v196 = vld [vmem:[%s1 + $0x190] sm:$0xff]
      %v197 = vld [vmem:[%s1 + $0x198] sm:$0xff]
      %v198 = vld [vmem:[%s1 + $0x1a0] sm:$0xff]
      %v199 = vld [vmem:[%s1 + $0x1a8] sm:$0xff]
      %v200 = vld [vmem:[%s1 + $0x1b0] sm:$0xff]
      %v201 = vld [vmem:[%s1 + $0x1b8] sm:$0xff]
      %v202 = vld [vmem:[%s1 + $0x1c0] sm:$0xff]
      %v203 = vld [vmem:[%s1 + $0x1c8] sm:$0xff]
      %v204 = vld [vmem:[%s1 + $0x1d0] sm:$0xff]
      %v205 = vld [vmem:[%s1 + $0x1d8] sm:$0xff]
      %v206 = vld [vmem:[%s1 + $0x1e0] sm:$0xff]
      %v207 = vld [vmem:[%s1 + $0x1e8] sm:$0xff]
      %v208 = vld [vmem:[%s1 + $0x1f0] sm:$0xff]
      %v209 = vld [vmem:[%s1 + $0x1f8] sm:$0xff]
      %210 = vmatprep.subr.mxu0 0.0
      %211 = vmatpush1.msra.mxu0 %v161
      %212 = vmatprep.subr.mxu0 0.0
      %213 = vmatpush1.msra.mxu0 %v160
      %214 = vmatprep.subr.mxu0 0.0
      %215 = vmatpush1.msra.mxu0 %v159
      %216 = vmatprep.subr.mxu0 0.0
      %217 = vmatpush1.msra.mxu0 %v158
      %218 = vmatprep.subr.mxu0 0.0
      %219 = vmatpush1.msra.mxu0 %v157
      %220 = vmatprep.subr.mxu0 0.0
      %221 = vmatpush1.msra.mxu0 %v156
      %222 = vmatprep.subr.mxu0 0.0
      %223 = vmatpush1.msra.mxu0 %v155
      %224 = vmatprep.subr.mxu0 0.0
      %225 = vmatpush1.msra.mxu0 %v154
      %226 = vmatprep.subr.mxu0 0.0
      %227 = vmatpush1.msra.mxu0 %v153
      %228 = vmatprep.subr.mxu0 0.0
      %229 = vmatpush1.msra.mxu0 %v152
      %230 = vmatprep.subr.mxu0 0.0
      %231 = vmatpush1.msra.mxu0 %v151
      %232 = vmatprep.subr.mxu0 0.0
      %233 = vmatpush1.msra.mxu0 %v150
      %234 = vmatprep.subr.mxu0 0.0
      %235 = vmatpush1.msra.mxu0 %v149
      %236 = vmatprep.subr.mxu0 0.0
      %237 = vmatpush1.msra.mxu0 %v148
      %238 = vmatprep.subr.mxu0 0.0
      %239 = vmatpush1.msra.mxu0 %v147
      %240 = vmatprep.subr.mxu0 0.0
      %241 = vmatpush1.msra.mxu0 %v146
      %242 = vmatprep.subr.mxu0 0.0
      %243 = vmatpush2.msra.mxu0 %v177
      %244 = vmatprep.subr.mxu0 0.0
      %245 = vmatpush2.msra.mxu0 %v176
      %246 = vmatprep.subr.mxu0 0.0
      %247 = vmatpush2.msra.mxu0 %v175
      %248 = vmatprep.subr.mxu0 0.0
      %249 = vmatpush2.msra.mxu0 %v174
      %250 = vmatprep.subr.mxu0 0.0
      %251 = vmatpush2.msra.mxu0 %v173
      %252 = vmatprep.subr.mxu0 0.0
      %253 = vmatpush2.msra.mxu0 %v172
      %254 = vmatprep.subr.mxu0 0.0
      %255 = vmatpush2.msra.mxu0 %v171
      %256 = vmatprep.subr.mxu0 0.0
      %257 = vmatpush2.msra.mxu0 %v170
      %258 = vmatprep.subr.mxu0 0.0
      %259 = vmatpush2.msra.mxu0 %v169
      %260 = vmatprep.subr.mxu0 0.0
      %261 = vmatpush2.msra.mxu0 %v168
      %262 = vmatprep.subr.mxu0 0.0
      %263 = vmatpush2.msra.mxu0 %v167
      %264 = vmatprep.subr.mxu0 0.0
      %265 = vmatpush2.msra.mxu0 %v166
      %266 = vmatprep.subr.mxu0 0.0
      %267 = vmatpush2.msra.mxu0 %v165
      %268 = vmatprep.subr.mxu0 0.0
      %269 = vmatpush2.msra.mxu0 %v164
      %270 = vmatprep.subr.mxu0 0.0
      %271 = vmatpush2.msra.mxu0 %v163
      %272 = vmatprep.subr.mxu0 0.0
      %273 = vmatpush2.msra.mxu0 %v162
      %274 = vmatprep.mubr.f32.mxu0 %v143
      %275 = vmatmul.mubr.f32.gmra.mxu0 %v142
      %v276 = vpop.f32.mrf.mxu0
      %v277 = vadd.f32 0.0, %v276
      %v278 = vpop.f32.mrf.mxu0
      %279 = vdwg.mxu0
      %280 = vmatprep.subr.mxu0 0.0
      %281 = vmatpush1.msra.mxu0 %v193
      %282 = vmatprep.subr.mxu0 0.0
      %283 = vmatpush1.msra.mxu0 %v192
      %284 = vmatprep.subr.mxu0 0.0
      %285 = vmatpush1.msra.mxu0 %v191
      %286 = vmatprep.subr.mxu0 0.0
      %287 = vmatpush1.msra.mxu0 %v190
      %288 = vmatprep.subr.mxu0 0.0
      %289 = vmatpush1.msra.mxu0 %v189
      %290 = vmatprep.subr.mxu0 0.0
      %291 = vmatpush1.msra.mxu0 %v188
      %292 = vmatprep.subr.mxu0 0.0
      %293 = vmatpush1.msra.mxu0 %v187
      %294 = vmatprep.subr.mxu0 0.0
      %295 = vmatpush1.msra.mxu0 %v186
      %296 = vmatprep.subr.mxu0 0.0
      %297 = vmatpush1.msra.mxu0 %v185
      %298 = vmatprep.subr.mxu0 0.0
      %299 = vmatpush1.msra.mxu0 %v184
      %300 = vmatprep.subr.mxu0 0.0
      %301 = vmatpush1.msra.mxu0 %v183
      %302 = vmatprep.subr.mxu0 0.0
      %303 = vmatpush1.msra.mxu0 %v182
      %304 = vmatprep.subr.mxu0 0.0
      %305 = vmatpush1.msra.mxu0 %v181
      %306 = vmatprep.subr.mxu0 0.0
      %307 = vmatpush1.msra.mxu0 %v180
      %308 = vmatprep.subr.mxu0 0.0
      %309 = vmatpush1.msra.mxu0 %v179
      %310 = vmatprep.subr.mxu0 0.0
      %311 = vmatpush1.msra.mxu0 %v178
      %312 = vmatprep.subr.mxu0 0.0
      %313 = vmatpush2.msra.mxu0 %v209
      %314 = vmatprep.subr.mxu0 0.0
      %315 = vmatpush2.msra.mxu0 %v208
      %316 = vmatprep.subr.mxu0 0.0
      %317 = vmatpush2.msra.mxu0 %v207
      %318 = vmatprep.subr.mxu0 0.0
      %319 = vmatpush2.msra.mxu0 %v206
      %320 = vmatprep.subr.mxu0 0.0
      %321 = vmatpush2.msra.mxu0 %v205
      %322 = vmatprep.subr.mxu0 0.0
      %323 = vmatpush2.msra.mxu0 %v204
      %324 = vmatprep.subr.mxu0 0.0
      %325 = vmatpush2.msra.mxu0 %v203
      %326 = vmatprep.subr.mxu0 0.0
      %327 = vmatpush2.msra.mxu0 %v202
      %328 = vmatprep.subr.mxu0 0.0
      %329 = vmatpush2.msra.mxu0 %v201
      %330 = vmatprep.subr.mxu0 0.0
      %331 = vmatpush2.msra.mxu0 %v200
      %332 = vmatprep.subr.mxu0 0.0
      %333 = vmatpush2.msra.mxu0 %v199
      %334 = vmatprep.subr.mxu0 0.0
      %335 = vmatpush2.msra.mxu0 %v198
      %336 = vmatprep.subr.mxu0 0.0
      %337 = vmatpush2.msra.mxu0 %v197
      %338 = vmatprep.subr.mxu0 0.0
      %339 = vmatpush2.msra.mxu0 %v196
      %340 = vmatprep.subr.mxu0 0.0
      %341 = vmatpush2.msra.mxu0 %v195
      %342 = vmatprep.subr.mxu0 0.0
      %343 = vmatpush2.msra.mxu0 %v194
      %344 = vmatprep.mubr.f32.mxu0 %v145
      %345 = vmatmul.mubr.f32.gmra.mxu0 %v144
      %v346 = vpop.f32.mrf.mxu0
      %v347 = vadd.f32 %v277, %v346
      %v348 = vpop.f32.mrf.mxu0
      %349 = vdwg.mxu0
      %350 = vst [vmem:[%s141] sm:$0xff] %v347
      %p351 = scmp.lt.s32.totalorder %s13, 1
      %s352 = scalar_select %p351, %s13, 1
      %s353 = smul.addr %s352, 8
      %s354 = scalar_lea.vmem %s2, %s353
      // Predicated region
      $region29: #{mriacq_forward.1} parent=27 // pred_check
        %p355 = pneg %p78
      $region30: #{mriacq_forward.1} parent=27 // pred_check_branch
        %357 = sbr.rel (%p355) target = $region32
      $region31: #{mriacq_forward.1} parent=27 // pred_region
        _
      $region32: #{mriacq_forward.1} parent=27 // pred_fallthru
        _
    $region28: #{mriacq_forward.1} parent=5 // pred_fallthru
      _
    %p358 = scmp.le.s32.totalorder 2, %s8
    // Predicated region
    $region33: #{mriacq_forward.1} parent=5 // pred_check
      %p359 = pneg %p358
    $region34: #{mriacq_forward.1} parent=5 // pred_check_branch
      %361 = sbr.rel (%p359) target = $region36
    $region35: #{mriacq_forward.1} parent=5 // pred_region
      %s362 = ssub.s32 %s8, 2
      // Predicated region
      $region37: #{mriacq_forward.1} parent=35 // pred_check
        %p363 = pneg %p84
      $region38: #{mriacq_forward.1} parent=35 // pred_check_branch
        %365 = sbr.rel (%p363) target = $region40
      $region39: #{mriacq_forward.1} parent=35 // pred_region
        %p366 = scmp.lt.s32.totalorder %s14, 1
        %s367 = scalar_select %p366, %s14, 1
        %s368 = smul.addr %s367, 8
        %s369 = scalar_lea.vmem %s2, %s368
      $region40: #{mriacq_forward.1} parent=35 // pred_fallthru
        _
    $region36: #{mriacq_forward.1} parent=5 // pred_fallthru
      _
  $region6: #{mriacq_forward.1} parent=0 // loop_footer
    %s12 = sadd.s32 1, %s8
  $region7: #{mriacq_forward.1} parent=0 // loop_footer_branch
    %7 = sbr.rel target = $region3
  $region8: #{mriacq_forward.1} parent=0 // loop_exit
    _

</llo_original>
